<compile_context>
chip_gen: v5e
topology: v5e:2x2
jax: 0.10.0
libtpu: 0.0.40
codegen_flags: <defaults>
</compile_context>

<pallas_src>
import jax
import jax.numpy as jnp
from jax.experimental import pallas as pl
from jax.experimental.pallas import tpu as pltpu

_MIB = 1 << 20


def _outconv_kernel(w_ref, b_ref, x_ref, o_ref):
    # w_ref: (C_out, C_in)   b_ref: (C_out, 1)
    # x_ref: (Nb, C_in, T)   o_ref: (Nb, C_out, T)   -- T = lane-dense pixel tile
    acc = jnp.einsum("oc,nct->not", w_ref[...], x_ref[...],
                     preferred_element_type=jnp.float32)
    o_ref[...] = (acc + b_ref[...][None]).astype(o_ref.dtype)


def _hw_budgets():
    """Returns (num_tensorcores, target bytes per grid step, VMEM budget bytes)."""
    try:
        vmem = int(pltpu.get_tpu_info().vmem_capacity_bytes)
        if 0 < vmem <= 64 * _MIB:
            # v7x-like: 64 MiB VMEM per TC, 2 TCs/chip, 3.2 TB/s HBM.
            return 2, 2 * _MIB, 24 * _MIB
        # v5e/v6e-like: 128 MiB VMEM, 1 TC/chip.
        return 1, 1 * _MIB, 96 * _MIB
    except Exception:
        # Unknown chip: conservative (fits every generation).
        return 1, 1 * _MIB, 24 * _MIB


def outconv_pallas(x_nchw, weight_oihw, bias, *, compute_dtype=None):
    """1x1 Conv2d forward (nn.Conv2d(in_ch, out_ch, 1) semantics).

    x_nchw: (N, C_in, H, W); weight_oihw: (C_out, C_in, 1, 1); bias: (C_out,).
    Returns (N, C_out, H, W) in the input dtype.
    compute_dtype=jnp.bfloat16 halves HBM traffic on v6e/v7x (accumulation
    stays f32); default None keeps the module's dtype untouched.
    """
    N, C_in, H, W = x_nchw.shape
    C_out = weight_oihw.shape[0]
    HW = H * W
    out_dtype = x_nchw.dtype

    if compute_dtype is not None:
        x_nchw = x_nchw.astype(compute_dtype)
        weight_oihw = weight_oihw.astype(compute_dtype)
        bias = bias.astype(compute_dtype)

    # Free reshapes on the native NCHW layout (no transposes).
    x3 = x_nchw.reshape(N, C_in, HW)
    w = weight_oihw[:, :, 0, 0]        # (C_out, C_in)
    b = bias.reshape(C_out, 1)         # sublane vector, broadcasts along lanes

    dtype_bytes = jnp.dtype(x3.dtype).itemsize
    per_pixel_bytes = (C_in + C_out) * dtype_bytes

    num_cores, target_bytes, vmem_budget = _hw_budgets()
    # Double-buffered (in + out) tiles must stay inside the VMEM budget.
    step_bytes = min(target_bytes, vmem_budget // 2)

    # Pixel tile: full HW when it fits (always a legal block), else a multiple
    # of 128 sized so each grid step moves ~step_bytes. Clamped to >= 128.
    raw_tile = max(128, (step_bytes // per_pixel_bytes) // 128 * 128)
    tile_hw = HW if HW <= raw_tile else raw_tile
    n_hw_tiles = int(pl.cdiv(HW, tile_hw))

    # Small images: pack several samples per grid step (bigger DMAs, fewer
    # steps). Keep Nb a divisor of N so there are no padded batch blocks.
    nb = 1
    if tile_hw == HW:
        bytes_per_sample = HW * per_pixel_bytes
        nb = int(min(N, max(1, step_bytes // bytes_per_sample)))
        while N % nb != 0:
            nb -= 1
    n_batch_tiles = N // nb

    # v7x: keep >= 2 parallel grid steps so both TensorCores pull bandwidth.
    if num_cores >= 2 and n_batch_tiles * n_hw_tiles < 2:
        if nb > 1:
            nb = max(1, nb // 2)
            while N % nb != 0:
                nb -= 1
            n_batch_tiles = N // nb
        elif HW > 128:
            half = max(128, -(-((HW + 1) // 2) // 128) * 128)
            if half < HW:
                tile_hw = half
                n_hw_tiles = int(pl.cdiv(HW, tile_hw))

    cost = pl.CostEstimate(
        flops=2 * N * HW * C_in * C_out,
        transcendentals=0,
        bytes_accessed=(N * HW * (C_in + C_out) * dtype_bytes
                        + (C_out * C_in + C_out) * dtype_bytes),
    )

    out3 = pl.pallas_call(
        _outconv_kernel,
        out_shape=jax.ShapeDtypeStruct((N, C_out, HW), out_dtype),
        grid_spec=pltpu.PrefetchScalarGridSpec(
            num_scalar_prefetch=0,
            grid=(n_batch_tiles, n_hw_tiles),
            in_specs=[
                pl.BlockSpec((C_out, C_in), lambda i, p: (0, 0)),
                pl.BlockSpec((C_out, 1), lambda i, p: (0, 0)),
                pl.BlockSpec((nb, C_in, tile_hw), lambda i, p: (i, 0, p)),
            ],
            out_specs=pl.BlockSpec((nb, C_out, tile_hw), lambda i, p: (i, 0, p)),
        ),
        compiler_params=pltpu.CompilerParams(
            dimension_semantics=("parallel", "parallel"),
            vmem_limit_bytes=int(vmem_budget + 2 * _MIB),
        ),
        cost_estimate=cost,
    )(w, b, x3)

    return out3.reshape(N, C_out, H, W)


if __name__ == "__main__":
    key = jax.random.PRNGKey(0)
    k_x, k_w, k_b = jax.random.split(key, 3)

    # Small shapes consistent with the module: batch=2, in_ch=4, out_ch=3, spatial=16.
    N, C_in, C_out, H, W = 2, 4, 3, 16, 16

    x = jax.random.normal(k_x, (N, C_in, H, W), dtype=jnp.float32)
    weight = jax.random.normal(k_w, (C_out, C_in, 1, 1), dtype=jnp.float32) * 0.1
    bias = jax.random.normal(k_b, (C_out,), dtype=jnp.float32) * 0.1

    out = outconv_pallas(x, weight, bias)
    out = jax.block_until_ready(out)

    # Reference check against plain-JAX 1x1 conv semantics (PyTorch f32 default).
    ref = jnp.einsum("nchw,oc->nohw", x, weight[:, :, 0, 0]) + bias[None, :, None, None]
    assert out.shape == (N, C_out, H, W)
    assert jnp.allclose(out, ref, atol=1e-5, rtol=1e-5)

    print("KERNEL_OK")
</pallas_src>

<mosaic_0001>
module attributes {stable_mosaic.version = 11 : i64} {
  func.func @_outconv_kernel(%arg0: i32, %arg1: i32, %arg2: memref<3x4xf32, #tpu.memory_space<vmem>>, %arg3: memref<3x1xf32, #tpu.memory_space<vmem>>, %arg4: memref<2x4x256xf32, #tpu.memory_space<vmem>>, %arg5: memref<2x3x256xf32, #tpu.memory_space<vmem>>) attributes {dimension_semantics = [#tpu.dimension_semantics<parallel>, #tpu.dimension_semantics<parallel>], iteration_bounds = array<i64: 1, 1>, scalar_prefetch = 0 : i64, scratch_operands = 0 : i64, tpu.core_type = #tpu.core_type<tc>, window_params = [{pipeline_mode = #tpu.pipeline_mode<synchronous>, transform_indices = @transform_0, window_bounds = array<i64: 3, 4>}, {pipeline_mode = #tpu.pipeline_mode<synchronous>, transform_indices = @transform_1, window_bounds = array<i64: 3, 1>}, {transform_indices = @transform_2, window_bounds = array<i64: 2, 4, 256>}, {transform_indices = @transform_3, window_bounds = array<i64: 2, 3, 256>}]} {
    %c0 = arith.constant 0 : index
    %c0_0 = arith.constant 0 : index
    %0 = vector.load %arg2[%c0, %c0_0] : memref<3x4xf32, #tpu.memory_space<vmem>>, vector<3x4xf32>
    %c0_1 = arith.constant 0 : index
    %c0_2 = arith.constant 0 : index
    %c0_3 = arith.constant 0 : index
    %1 = vector.load %arg4[%c0_1, %c0_2, %c0_3] : memref<2x4x256xf32, #tpu.memory_space<vmem>>, vector<2x4x256xf32>
    "tpu.trace_start"() <{level = 10 : i32, message = "oc,nct->not"}> : () -> ()
    %cst = arith.constant dense<0.000000e+00> : vector<2x256x3xf32>
    %2 = tpu.matmul %1, %0, %cst {dimension_numbers = #tpu.dot_dimension_numbers<[1], [1], [0, 2], [0], [0, 0, 0, 2, 1, 0], [], []>} : vector<2x4x256xf32>, vector<3x4xf32>, vector<2x256x3xf32> -> vector<2x256x3xf32>
    %3 = tpu.transpose %2, [0, 2, 1] : vector<2x256x3xf32> -> vector<2x3x256xf32>
    "tpu.trace_stop"() : () -> ()
    %c0_4 = arith.constant 0 : index
    %c0_5 = arith.constant 0 : index
    %4 = vector.load %arg3[%c0_4, %c0_5] : memref<3x1xf32, #tpu.memory_space<vmem>>, vector<3x1xf32>
    %5 = vector.shape_cast %4 : vector<3x1xf32> to vector<1x3x1xf32>
    %6 = vector.broadcast %5 : vector<1x3x1xf32> to vector<2x3x256xf32>
    %7 = arith.addf %3, %6 : vector<2x3x256xf32>
    %c0_6 = arith.constant 0 : index
    %c0_7 = arith.constant 0 : index
    %c0_8 = arith.constant 0 : index
    %8 = vector.load %arg5[%c0_6, %c0_7, %c0_8] : memref<2x3x256xf32, #tpu.memory_space<vmem>>, vector<2x3x256xf32>
    tpu.vector_store %arg5[%c0_6, %c0_7, %c0_8], %7 {strides = array<i32>} : memref<2x3x256xf32, #tpu.memory_space<vmem>>, vector<2x3x256xf32>,
    return
  }
  func.func @transform_0(%arg0: i32, %arg1: i32) -> (i32, i32) {
    %c0_i32 = arith.constant 0 : i32
    %c0_i32_0 = arith.constant 0 : i32
    %c0_i32_1 = arith.constant 0 : i32
    return %c0_i32, %c0_i32_0 : i32, i32
  }
  func.func @transform_1(%arg0: i32, %arg1: i32) -> (i32, i32) {
    %c0_i32 = arith.constant 0 : i32
    %c0_i32_0 = arith.constant 0 : i32
    %c0_i32_1 = arith.constant 0 : i32
    return %c0_i32, %c0_i32_0 : i32, i32
  }
  func.func @transform_2(%arg0: i32, %arg1: i32) -> (i32, i32, i32) {
    %c0_i32 = arith.constant 0 : i32
    %c0_i32_0 = arith.constant 0 : i32
    return %arg0, %c0_i32, %arg1 : i32, i32, i32
  }
  func.func @transform_3(%arg0: i32, %arg1: i32) -> (i32, i32, i32) {
    %c0_i32 = arith.constant 0 : i32
    %c0_i32_0 = arith.constant 0 : i32
    return %arg0, %c0_i32, %arg1 : i32, i32, i32
  }
}

</mosaic_0001>

<llo_original>
// kernel: tpu_custom_call.1
$region0: #{tpu_custom_call.1}
  #allocation0 [shape = 'u32[]', space=smem, size = 0x4, offset = 0x4, fixed_abs, tag = 'smem constant byte address 0x4 - core index']
  #allocation1 [shape = 'u32[72,128]{1,0:T(1,128)}', space=vmem, size = 0x9000, scoped, tag = 'internal scratch']
  %s0 = inlined_call_operand.vmem [shape: f32[3,4], index: 0, kind: input, shape index: {}]
  %s1 = inlined_call_operand.vmem [shape: f32[3,1], index: 1, kind: input, shape index: {}]
  %s2 = inlined_call_operand.hbm [shape: f32[2,4,256], index: 2, kind: input, shape index: {}]
  %s3 = inlined_call_operand.vmem [shape: f32[2,3,256], index: 3, kind: output, shape index: {}]
  %s4 = sld [smem:[#allocation0]]
  $region26: #{tpu_custom_call.1} parent=0
    _
  %s6 = ssub.s32 1, %s4
  %s7 = scalar_select 0, %s6, %s4
  $region1: #{tpu_custom_call.1} parent=0
    #allocation2 [shape = 'u8[8192]{0}', space=vmem, size = 0x2000, scoped, tag = 'input window, operand 2, single buffered']
    #allocation3 [shape = 's32[1]{0}', space=sflag, size = 0x4, scoped, tag = 'scoped memory for tpu_custom_call.1']
    %8 = vsyncpa [#allocation3], 0
    // Predicated region
    $region2: #{tpu_custom_call.1} parent=1 // pred_check
      _
    $region3: #{tpu_custom_call.1} parent=1 // pred_check_branch
      %10 = sbr.rel (0) target = $region5
    $region4: #{tpu_custom_call.1} parent=1 // pred_region
      _
    $region5: #{tpu_custom_call.1} parent=1 // pred_fallthru
      _
    // Predicated region
    $region6: #{tpu_custom_call.1} parent=1 // pred_check
      _
    $region7: #{tpu_custom_call.1} parent=1 // pred_check_branch
      %12 = sbr.rel (0) target = $region9
    $region8: #{tpu_custom_call.1} parent=1 // pred_region
      _
    $region9: #{tpu_custom_call.1} parent=1 // pred_fallthru
      _
    // Predicated region
    $region10: #{tpu_custom_call.1} parent=1 // pred_check
      _
    $region11: #{tpu_custom_call.1} parent=1 // pred_check_branch
      %14 = sbr.rel (0) target = $region13
    $region12: #{tpu_custom_call.1} parent=1 // pred_region
      %16 = vsyncadd [#allocation3], 0
      %s17 = sshll.u32 %s2, 4
      %s18 = int_to_ptr.hbm [resolvable:$true] %s17
      %s19 = sshll.u32 [#allocation2], 4
      %s20 = int_to_ptr.vmem [resolvable:$true] %s19
      %25 = dma.hbm_to_vmem [thread:$0]  %s18, 256, %s20, [#allocation3], 128, 128, 8
    $region13: #{tpu_custom_call.1} parent=1 // pred_fallthru
      _
    // Predicated region
    $region14: #{tpu_custom_call.1} parent=1 // pred_check
      _
    $region15: #{tpu_custom_call.1} parent=1 // pred_check_branch
      %27 = sbr.rel (0) target = $region17
    $region16: #{tpu_custom_call.1} parent=1 // pred_region
      %29 = dma.done [#allocation3], 256
    $region17: #{tpu_custom_call.1} parent=1 // pred_fallthru
      _
    %v30 = vld [vmem:[%s0] sm:$0x7]
    %v31 = vld [vmem:[#allocation2] sm:$0xff]
    %v32 = vld [vmem:[#allocation2 + $0x8] sm:$0xff]
    %35 = vst [vmem:[#allocation1] ss:$2 sm:$0xff] %v31
    %v36 = vld.sshfl [vmem:[#allocation1] sm:$0xff pattern:$0x75316420]
    %v37 = vld.sshfl [vmem:[#allocation1 + $0x8] sm:$0xff pattern:$0x75316420]
    %s38 = scalar_lea.vmem [#allocation1], 16
    %39 = vst [vmem:[%s38] ss:$2 sm:$0xff] %v32
    %v40 = vld.sshfl [vmem:[#allocation1 + $0x10] sm:$0xff pattern:$0x75316420]
    %v41 = vld.sshfl [vmem:[#allocation1 + $0x18] sm:$0xff pattern:$0x75316420]
    %46 = vxpose.xlu0.b32.start [1/16] %v36, 128
    %47 = vxpose.xlu0.b32.cont [2/16] 0.0, 128
    %48 = vxpose.xlu0.b32.cont [3/16] 0.0, 128
    %49 = vxpose.xlu0.b32.cont [4/16] 0.0, 128
    %50 = vxpose.xlu0.b32.cont [5/16] 0.0, 128
    %51 = vxpose.xlu0.b32.cont [6/16] 0.0, 128
    %52 = vxpose.xlu0.b32.cont [7/16] 0.0, 128
    %53 = vxpose.xlu0.b32.cont [8/16] 0.0, 128
    %54 = vxpose.xlu0.b32.cont [9/16] 0.0, 128
    %55 = vxpose.xlu0.b32.cont [10/16] 0.0, 128
    %56 = vxpose.xlu0.b32.cont [11/16] 0.0, 128
    %57 = vxpose.xlu0.b32.cont [12/16] 0.0, 128
    %58 = vxpose.xlu0.b32.cont [13/16] 0.0, 128
    %59 = vxpose.xlu0.b32.cont [14/16] 0.0, 128
    %60 = vxpose.xlu0.b32.cont [15/16] 0.0, 128
    %61 = vxpose.xlu0.b32.end [16/16] 0.0, 128
    %v62 = vpop.trf.xlu0
    %v63 = vpop.trf.xlu0
    %v64 = vpop.trf.xlu0
    %v65 = vpop.trf.xlu0
    %v66 = vpop.trf.xlu0
    %v67 = vpop.trf.xlu0
    %v68 = vpop.trf.xlu0
    %v69 = vpop.trf.xlu0
    %v70 = vpop.trf.xlu0
    %v71 = vpop.trf.xlu0
    %v72 = vpop.trf.xlu0
    %v73 = vpop.trf.xlu0
    %v74 = vpop.trf.xlu0
    %v75 = vpop.trf.xlu0
    %v76 = vpop.trf.xlu0
    %v77 = vpop.trf.xlu0
    %78 = vxpose.xlu0.b32.start [1/16] %v37, 128
    %79 = vxpose.xlu0.b32.cont [2/16] 0.0, 128
    %80 = vxpose.xlu0.b32.cont [3/16] 0.0, 128
    %81 = vxpose.xlu0.b32.cont [4/16] 0.0, 128
    %82 = vxpose.xlu0.b32.cont [5/16] 0.0, 128
    %83 = vxpose.xlu0.b32.cont [6/16] 0.0, 128
    %84 = vxpose.xlu0.b32.cont [7/16] 0.0, 128
    %85 = vxpose.xlu0.b32.cont [8/16] 0.0, 128
    %86 = vxpose.xlu0.b32.cont [9/16] 0.0, 128
    %87 = vxpose.xlu0.b32.cont [10/16] 0.0, 128
    %88 = vxpose.xlu0.b32.cont [11/16] 0.0, 128
    %89 = vxpose.xlu0.b32.cont [12/16] 0.0, 128
    %90 = vxpose.xlu0.b32.cont [13/16] 0.0, 128
    %91 = vxpose.xlu0.b32.cont [14/16] 0.0, 128
    %92 = vxpose.xlu0.b32.cont [15/16] 0.0, 128
    %93 = vxpose.xlu0.b32.end [16/16] 0.0, 128
    %v94 = vpop.trf.xlu0
    %v95 = vpop.trf.xlu0
    %v96 = vpop.trf.xlu0
    %v97 = vpop.trf.xlu0
    %v98 = vpop.trf.xlu0
    %v99 = vpop.trf.xlu0
    %v100 = vpop.trf.xlu0
    %v101 = vpop.trf.xlu0
    %v102 = vpop.trf.xlu0
    %v103 = vpop.trf.xlu0
    %v104 = vpop.trf.xlu0
    %v105 = vpop.trf.xlu0
    %v106 = vpop.trf.xlu0
    %v107 = vpop.trf.xlu0
    %v108 = vpop.trf.xlu0
    %v109 = vpop.trf.xlu0
    %110 = vxpose.xlu0.b32.start [1/16] %v40, 128
    %111 = vxpose.xlu0.b32.cont [2/16] 0.0, 128
    %112 = vxpose.xlu0.b32.cont [3/16] 0.0, 128
    %113 = vxpose.xlu0.b32.cont [4/16] 0.0, 128
    %114 = vxpose.xlu0.b32.cont [5/16] 0.0, 128
    %115 = vxpose.xlu0.b32.cont [6/16] 0.0, 128
    %116 = vxpose.xlu0.b32.cont [7/16] 0.0, 128
    %117 = vxpose.xlu0.b32.cont [8/16] 0.0, 128
    %118 = vxpose.xlu0.b32.cont [9/16] 0.0, 128
    %119 = vxpose.xlu0.b32.cont [10/16] 0.0, 128
    %120 = vxpose.xlu0.b32.cont [11/16] 0.0, 128
    %121 = vxpose.xlu0.b32.cont [12/16] 0.0, 128
    %122 = vxpose.xlu0.b32.cont [13/16] 0.0, 128
    %123 = vxpose.xlu0.b32.cont [14/16] 0.0, 128
    %124 = vxpose.xlu0.b32.cont [15/16] 0.0, 128
    %125 = vxpose.xlu0.b32.end [16/16] 0.0, 128
    %v126 = vpop.trf.xlu0
    %v127 = vpop.trf.xlu0
    %v128 = vpop.trf.xlu0
    %v129 = vpop.trf.xlu0
    %v130 = vpop.trf.xlu0
    %v131 = vpop.trf.xlu0
    %v132 = vpop.trf.xlu0
    %v133 = vpop.trf.xlu0
    %v134 = vpop.trf.xlu0
    %v135 = vpop.trf.xlu0
    %v136 = vpop.trf.xlu0
    %v137 = vpop.trf.xlu0
    %v138 = vpop.trf.xlu0
    %v139 = vpop.trf.xlu0
    %v140 = vpop.trf.xlu0
    %v141 = vpop.trf.xlu0
    %142 = vxpose.xlu0.b32.start [1/16] %v41, 128
    %143 = vxpose.xlu0.b32.cont [2/16] 0.0, 128
    %144 = vxpose.xlu0.b32.cont [3/16] 0.0, 128
    %145 = vxpose.xlu0.b32.cont [4/16] 0.0, 128
    %146 = vxpose.xlu0.b32.cont [5/16] 0.0, 128
    %147 = vxpose.xlu0.b32.cont [6/16] 0.0, 128
    %148 = vxpose.xlu0.b32.cont [7/16] 0.0, 128
    %149 = vxpose.xlu0.b32.cont [8/16] 0.0, 128
    %150 = vxpose.xlu0.b32.cont [9/16] 0.0, 128
    %151 = vxpose.xlu0.b32.cont [10/16] 0.0, 128
    %152 = vxpose.xlu0.b32.cont [11/16] 0.0, 128
    %153 = vxpose.xlu0.b32.cont [12/16] 0.0, 128
    %154 = vxpose.xlu0.b32.cont [13/16] 0.0, 128
    %155 = vxpose.xlu0.b32.cont [14/16] 0.0, 128
    %156 = vxpose.xlu0.b32.cont [15/16] 0.0, 128
    %157 = vxpose.xlu0.b32.end [16/16] 0.0, 128
    %v158 = vpop.trf.xlu0
    %v159 = vpop.trf.xlu0
    %v160 = vpop.trf.xlu0
    %v161 = vpop.trf.xlu0
    %v162 = vpop.trf.xlu0
    %v163 = vpop.trf.xlu0
    %v164 = vpop.trf.xlu0
    %v165 = vpop.trf.xlu0
    %v166 = vpop.trf.xlu0
    %v167 = vpop.trf.xlu0
    %v168 = vpop.trf.xlu0
    %v169 = vpop.trf.xlu0
    %v170 = vpop.trf.xlu0
    %v171 = vpop.trf.xlu0
    %v172 = vpop.trf.xlu0
    %v173 = vpop.trf.xlu0
    %vm174 = vcmask 31744
    %v176 = vsel %vm174, %v62, 0
    %v179 = vsel %vm174, %v63, 0
    %v182 = vsel %vm174, %v64, 0
    %v185 = vsel %vm174, %v65, 0
    %v188 = vsel %vm174, %v66, 0
    %v191 = vsel %vm174, %v67, 0
    %v194 = vsel %vm174, %v68, 0
    %v197 = vsel %vm174, %v69, 0
    %v200 = vsel %vm174, %v70, 0
    %v203 = vsel %vm174, %v71, 0
    %v206 = vsel %vm174, %v72, 0
    %v209 = vsel %vm174, %v73, 0
    %v212 = vsel %vm174, %v74, 0
    %v215 = vsel %vm174, %v75, 0
    %v218 = vsel %vm174, %v76, 0
    %v221 = vsel %vm174, %v77, 0
    %v224 = vsel %vm174, %v94, 0
    %v227 = vsel %vm174, %v95, 0
    %v230 = vsel %vm174, %v96, 0
    %v233 = vsel %vm174, %v97, 0
    %v236 = vsel %vm174, %v98, 0
    %v239 = vsel %vm174, %v99, 0
    %v242 = vsel %vm174, %v100, 0
    %v245 = vsel %vm174, %v101, 0
    %v248 = vsel %vm174, %v102, 0
    %v251 = vsel %vm174, %v103, 0
    %v254 = vsel %vm174, %v104, 0
    %v257 = vsel %vm174, %v105, 0
    %v260 = vsel %vm174, %v106, 0
    %v263 = vsel %vm174, %v107, 0
    %v266 = vsel %vm174, %v108, 0
    %v269 = vsel %vm174, %v109, 0
    %v272 = vsel %vm174, %v126, 0
    %v275 = vsel %vm174, %v127, 0
    %v278 = vsel %vm174, %v128, 0
    %v281 = vsel %vm174, %v129, 0
    %v284 = vsel %vm174, %v130, 0
    %v287 = vsel %vm174, %v131, 0
    %v290 = vsel %vm174, %v132, 0
    %v293 = vsel %vm174, %v133, 0
    %v296 = vsel %vm174, %v134, 0
    %v299 = vsel %vm174, %v135, 0
    %v302 = vsel %vm174, %v136, 0
    %v305 = vsel %vm174, %v137, 0
    %v308 = vsel %vm174, %v138, 0
    %v311 = vsel %vm174, %v139, 0
    %v314 = vsel %vm174, %v140, 0
    %v317 = vsel %vm174, %v141, 0
    %v320 = vsel %vm174, %v158, 0
    %v323 = vsel %vm174, %v159, 0
    %v326 = vsel %vm174, %v160, 0
    %v329 = vsel %vm174, %v161, 0
    %v332 = vsel %vm174, %v162, 0
    %v335 = vsel %vm174, %v163, 0
    %v338 = vsel %vm174, %v164, 0
    %v341 = vsel %vm174, %v165, 0
    %v344 = vsel %vm174, %v166, 0
    %v347 = vsel %vm174, %v167, 0
    %v350 = vsel %vm174, %v168, 0
    %v353 = vsel %vm174, %v169, 0
    %v356 = vsel %vm174, %v170, 0
    %v359 = vsel %vm174, %v171, 0
    %v362 = vsel %vm174, %v172, 0
    %v365 = vsel %vm174, %v173, 0
    %v368 = vsel %vm174, %v30, 0
    %370 = vmatpush.xpose.msra.mxu0 0.0
    %371 = vmatpush.xpose.msra.mxu0 0.0
    %372 = vmatpush.xpose.msra.mxu0 0.0
    %373 = vmatpush.xpose.msra.mxu0 0.0
    %374 = vmatpush.xpose.msra.mxu0 0.0
    %375 = vmatpush.xpose.msra.mxu0 0.0
    %376 = vmatpush.xpose.msra.mxu0 0.0
    %377 = vmatpush.xpose.msra.mxu0 0.0
    %378 = vmatpush.xpose.msra.mxu0 0.0
    %379 = vmatpush.xpose.msra.mxu0 0.0
    %380 = vmatpush.xpose.msra.mxu0 0.0
    %381 = vmatpush.xpose.msra.mxu0 0.0
    %382 = vmatpush.xpose.msra.mxu0 0.0
    %383 = vmatpush.xpose.msra.mxu0 0.0
    %384 = vmatpush.xpose.msra.mxu0 0.0
    %385 = vmatpush.xpose.msra.mxu0 %v368
    %386 = vmatmul.f32.gmra.mxu0 %v176
    %v387 = vpop.f32.mrf.mxu0
    %v388 = vadd.f32 0.0, %v387
    %389 = vmatmul.f32.gmra.mxu0 %v179
    %v390 = vpop.f32.mrf.mxu0
    %v391 = vadd.f32 0.0, %v390
    %392 = vmatmul.f32.gmra.mxu0 %v182
    %v393 = vpop.f32.mrf.mxu0
    %v394 = vadd.f32 0.0, %v393
    %395 = vmatmul.f32.gmra.mxu0 %v185
    %v396 = vpop.f32.mrf.mxu0
    %v397 = vadd.f32 0.0, %v396
    %398 = vmatmul.f32.gmra.mxu0 %v188
    %v399 = vpop.f32.mrf.mxu0
    %v400 = vadd.f32 0.0, %v399
    %401 = vmatmul.f32.gmra.mxu0 %v191
    %v402 = vpop.f32.mrf.mxu0
    %v403 = vadd.f32 0.0, %v402
    %404 = vmatmul.f32.gmra.mxu0 %v194
    %v405 = vpop.f32.mrf.mxu0
    %v406 = vadd.f32 0.0, %v405
    %407 = vmatmul.f32.gmra.mxu0 %v197
    %v408 = vpop.f32.mrf.mxu0
    %v409 = vadd.f32 0.0, %v408
    %410 = vmatmul.f32.gmra.mxu0 %v200
    %v411 = vpop.f32.mrf.mxu0
    %v412 = vadd.f32 0.0, %v411
    %413 = vmatmul.f32.gmra.mxu0 %v203
    %v414 = vpop.f32.mrf.mxu0
    %v415 = vadd.f32 0.0, %v414
    %416 = vmatmul.f32.gmra.mxu0 %v206
    %v417 = vpop.f32.mrf.mxu0
    %v418 = vadd.f32 0.0, %v417
    %419 = vmatmul.f32.gmra.mxu0 %v209
    %v420 = vpop.f32.mrf.mxu0
    %v421 = vadd.f32 0.0, %v420
    %422 = vmatmul.f32.gmra.mxu0 %v212
    %v423 = vpop.f32.mrf.mxu0
    %v424 = vadd.f32 0.0, %v423
    %425 = vmatmul.f32.gmra.mxu0 %v215
    %v426 = vpop.f32.mrf.mxu0
    %v427 = vadd.f32 0.0, %v426
    %428 = vmatmul.f32.gmra.mxu0 %v218
    %v429 = vpop.f32.mrf.mxu0
    %v430 = vadd.f32 0.0, %v429
    %431 = vmatmul.f32.gmra.mxu0 %v221
    %v432 = vpop.f32.mrf.mxu0
    %v433 = vadd.f32 0.0, %v432
    %434 = vmatmul.f32.gmra.mxu0 %v224
    %v435 = vpop.f32.mrf.mxu0
    %v436 = vadd.f32 0.0, %v435
    %437 = vmatmul.f32.gmra.mxu0 %v227
    %v438 = vpop.f32.mrf.mxu0
    %v439 = vadd.f32 0.0, %v438
    %440 = vmatmul.f32.gmra.mxu0 %v230
    %v441 = vpop.f32.mrf.mxu0
    %v442 = vadd.f32 0.0, %v441
    %443 = vmatmul.f32.gmra.mxu0 %v233
    %v444 = vpop.f32.mrf.mxu0
    %v445 = vadd.f32 0.0, %v444
    %446 = vmatmul.f32.gmra.mxu0 %v236
    %v447 = vpop.f32.mrf.mxu0
    %v448 = vadd.f32 0.0, %v447
    %449 = vmatmul.f32.gmra.mxu0 %v239
    %v450 = vpop.f32.mrf.mxu0
    %v451 = vadd.f32 0.0, %v450
    %452 = vmatmul.f32.gmra.mxu0 %v242
    %v453 = vpop.f32.mrf.mxu0
    %v454 = vadd.f32 0.0, %v453
    %455 = vmatmul.f32.gmra.mxu0 %v245
    %v456 = vpop.f32.mrf.mxu0
    %v457 = vadd.f32 0.0, %v456
    %458 = vmatmul.f32.gmra.mxu0 %v248
    %v459 = vpop.f32.mrf.mxu0
    %v460 = vadd.f32 0.0, %v459
    %461 = vmatmul.f32.gmra.mxu0 %v251
    %v462 = vpop.f32.mrf.mxu0
    %v463 = vadd.f32 0.0, %v462
    %464 = vmatmul.f32.gmra.mxu0 %v254
    %v465 = vpop.f32.mrf.mxu0
    %v466 = vadd.f32 0.0, %v465
    %467 = vmatmul.f32.gmra.mxu0 %v257
    %v468 = vpop.f32.mrf.mxu0
    %v469 = vadd.f32 0.0, %v468
    %470 = vmatmul.f32.gmra.mxu0 %v260
    %v471 = vpop.f32.mrf.mxu0
    %v472 = vadd.f32 0.0, %v471
    %473 = vmatmul.f32.gmra.mxu0 %v263
    %v474 = vpop.f32.mrf.mxu0
    %v475 = vadd.f32 0.0, %v474
    %476 = vmatmul.f32.gmra.mxu0 %v266
    %v477 = vpop.f32.mrf.mxu0
    %v478 = vadd.f32 0.0, %v477
    %479 = vmatmul.f32.gmra.mxu0 %v269
    %v480 = vpop.f32.mrf.mxu0
    %v481 = vadd.f32 0.0, %v480
    %482 = vmatmul.f32.gmra.mxu0 %v272
    %v483 = vpop.f32.mrf.mxu0
    %v484 = vadd.f32 0.0, %v483
    %485 = vmatmul.f32.gmra.mxu0 %v275
    %v486 = vpop.f32.mrf.mxu0
    %v487 = vadd.f32 0.0, %v486
    %488 = vmatmul.f32.gmra.mxu0 %v278
    %v489 = vpop.f32.mrf.mxu0
    %v490 = vadd.f32 0.0, %v489
    %491 = vmatmul.f32.gmra.mxu0 %v281
    %v492 = vpop.f32.mrf.mxu0
    %v493 = vadd.f32 0.0, %v492
    %494 = vmatmul.f32.gmra.mxu0 %v284
    %v495 = vpop.f32.mrf.mxu0
    %v496 = vadd.f32 0.0, %v495
    %497 = vmatmul.f32.gmra.mxu0 %v287
    %v498 = vpop.f32.mrf.mxu0
    %v499 = vadd.f32 0.0, %v498
    %500 = vmatmul.f32.gmra.mxu0 %v290
    %v501 = vpop.f32.mrf.mxu0
    %v502 = vadd.f32 0.0, %v501
    %503 = vmatmul.f32.gmra.mxu0 %v293
    %v504 = vpop.f32.mrf.mxu0
    %v505 = vadd.f32 0.0, %v504
    %506 = vmatmul.f32.gmra.mxu0 %v296
    %v507 = vpop.f32.mrf.mxu0
    %v508 = vadd.f32 0.0, %v507
    %509 = vmatmul.f32.gmra.mxu0 %v299
    %v510 = vpop.f32.mrf.mxu0
    %v511 = vadd.f32 0.0, %v510
    %512 = vmatmul.f32.gmra.mxu0 %v302
    %v513 = vpop.f32.mrf.mxu0
    %v514 = vadd.f32 0.0, %v513
    %515 = vmatmul.f32.gmra.mxu0 %v305
    %v516 = vpop.f32.mrf.mxu0
    %v517 = vadd.f32 0.0, %v516
    %518 = vmatmul.f32.gmra.mxu0 %v308
    %v519 = vpop.f32.mrf.mxu0
    %v520 = vadd.f32 0.0, %v519
    %521 = vmatmul.f32.gmra.mxu0 %v311
    %v522 = vpop.f32.mrf.mxu0
    %v523 = vadd.f32 0.0, %v522
    %524 = vmatmul.f32.gmra.mxu0 %v314
    %v525 = vpop.f32.mrf.mxu0
    %v526 = vadd.f32 0.0, %v525
    %527 = vmatmul.f32.gmra.mxu0 %v317
    %v528 = vpop.f32.mrf.mxu0
    %v529 = vadd.f32 0.0, %v528
    %530 = vmatmul.f32.gmra.mxu0 %v320
    %v531 = vpop.f32.mrf.mxu0
    %v532 = vadd.f32 0.0, %v531
    %533 = vmatmul.f32.gmra.mxu0 %v323
    %v534 = vpop.f32.mrf.mxu0
    %v535 = vadd.f32 0.0, %v534
    %536 = vmatmul.f32.gmra.mxu0 %v326
    %v537 = vpop.f32.mrf.mxu0
    %v538 = vadd.f32 0.0, %v537
    %539 = vmatmul.f32.gmra.mxu0 %v329
    %v540 = vpop.f32.mrf.mxu0
    %v541 = vadd.f32 0.0, %v540
    %542 = vmatmul.f32.gmra.mxu0 %v332
    %v543 = vpop.f32.mrf.mxu0
    %v544 = vadd.f32 0.0, %v543
    %545 = vmatmul.f32.gmra.mxu0 %v335
    %v546 = vpop.f32.mrf.mxu0
    %v547 = vadd.f32 0.0, %v546
    %548 = vmatmul.f32.gmra.mxu0 %v338
    %v549 = vpop.f32.mrf.mxu0
    %v550 = vadd.f32 0.0, %v549
    %551 = vmatmul.f32.gmra.mxu0 %v341
    %v552 = vpop.f32.mrf.mxu0
    %v553 = vadd.f32 0.0, %v552
    %554 = vmatmul.f32.gmra.mxu0 %v344
    %v555 = vpop.f32.mrf.mxu0
    %v556 = vadd.f32 0.0, %v555
    %557 = vmatmul.f32.gmra.mxu0 %v347
    %v558 = vpop.f32.mrf.mxu0
    %v559 = vadd.f32 0.0, %v558
    %560 = vmatmul.f32.gmra.mxu0 %v350
    %v561 = vpop.f32.mrf.mxu0
    %v562 = vadd.f32 0.0, %v561
    %563 = vmatmul.f32.gmra.mxu0 %v353
    %v564 = vpop.f32.mrf.mxu0
    %v565 = vadd.f32 0.0, %v564
    %566 = vmatmul.f32.gmra.mxu0 %v356
    %v567 = vpop.f32.mrf.mxu0
    %v568 = vadd.f32 0.0, %v567
    %569 = vmatmul.f32.gmra.mxu0 %v359
    %v570 = vpop.f32.mrf.mxu0
    %v571 = vadd.f32 0.0, %v570
    %572 = vmatmul.f32.gmra.mxu0 %v362
    %v573 = vpop.f32.mrf.mxu0
    %v574 = vadd.f32 0.0, %v573
    %575 = vmatmul.f32.gmra.mxu0 %v365
    %v576 = vpop.f32.mrf.mxu0
    %v577 = vadd.f32 0.0, %v576
    %578 = vdwg.mxu0
    %579 = vxpose.xlu0.b32.start [1/16] %v388, 128
    %580 = vxpose.xlu0.b32.cont [2/16] %v391, 128
    %581 = vxpose.xlu0.b32.cont [3/16] %v394, 128
    %582 = vxpose.xlu0.b32.cont [4/16] %v397, 128
    %583 = vxpose.xlu0.b32.cont [5/16] %v400, 128
    %584 = vxpose.xlu0.b32.cont [6/16] %v403, 128
    %585 = vxpose.xlu0.b32.cont [7/16] %v406, 128
    %586 = vxpose.xlu0.b32.cont [8/16] %v409, 128
    %587 = vxpose.xlu0.b32.cont [9/16] %v412, 128
    %588 = vxpose.xlu0.b32.cont [10/16] %v415, 128
    %589 = vxpose.xlu0.b32.cont [11/16] %v418, 128
    %590 = vxpose.xlu0.b32.cont [12/16] %v421, 128
    %591 = vxpose.xlu0.b32.cont [13/16] %v424, 128
    %592 = vxpose.xlu0.b32.cont [14/16] %v427, 128
    %593 = vxpose.xlu0.b32.cont [15/16] %v430, 128
    %594 = vxpose.xlu0.b32.end [16/16] %v433, 128
    %v595 = vpop.trf.xlu0
    %v596 = vpop.trf.xlu0
    %v597 = vpop.trf.xlu0
    %v598 = vpop.trf.xlu0
    %v599 = vpop.trf.xlu0
    %v600 = vpop.trf.xlu0
    %v601 = vpop.trf.xlu0
    %v602 = vpop.trf.xlu0
    %v603 = vpop.trf.xlu0
    %v604 = vpop.trf.xlu0
    %v605 = vpop.trf.xlu0
    %v606 = vpop.trf.xlu0
    %v607 = vpop.trf.xlu0
    %v608 = vpop.trf.xlu0
    %v609 = vpop.trf.xlu0
    %v610 = vpop.trf.xlu0
    %611 = vxpose.xlu0.b32.start [1/16] %v436, 128
    %612 = vxpose.xlu0.b32.cont [2/16] %v439, 128
    %613 = vxpose.xlu0.b32.cont [3/16] %v442, 128
    %614 = vxpose.xlu0.b32.cont [4/16] %v445, 128
    %615 = vxpose.xlu0.b32.cont [5/16] %v448, 128
    %616 = vxpose.xlu0.b32.cont [6/16] %v451, 128
    %617 = vxpose.xlu0.b32.cont [7/16] %v454, 128
    %618 = vxpose.xlu0.b32.cont [8/16] %v457, 128
    %619 = vxpose.xlu0.b32.cont [9/16] %v460, 128
    %620 = vxpose.xlu0.b32.cont [10/16] %v463, 128
    %621 = vxpose.xlu0.b32.cont [11/16] %v466, 128
    %622 = vxpose.xlu0.b32.cont [12/16] %v469, 128
    %623 = vxpose.xlu0.b32.cont [13/16] %v472, 128
    %624 = vxpose.xlu0.b32.cont [14/16] %v475, 128
    %625 = vxpose.xlu0.b32.cont [15/16] %v478, 128
    %626 = vxpose.xlu0.b32.end [16/16] %v481, 128
    %v627 = vpop.trf.xlu0
    %v628 = vpop.trf.xlu0
    %v629 = vpop.trf.xlu0
    %v630 = vpop.trf.xlu0
    %v631 = vpop.trf.xlu0
    %v632 = vpop.trf.xlu0
    %v633 = vpop.trf.xlu0
    %v634 = vpop.trf.xlu0
    %v635 = vpop.trf.xlu0
    %v636 = vpop.trf.xlu0
    %v637 = vpop.trf.xlu0
    %v638 = vpop.trf.xlu0
    %v639 = vpop.trf.xlu0
    %v640 = vpop.trf.xlu0
    %v641 = vpop.trf.xlu0
    %v642 = vpop.trf.xlu0
    %643 = vxpose.xlu0.b32.start [1/16] %v484, 128
    %644 = vxpose.xlu0.b32.cont [2/16] %v487, 128
    %645 = vxpose.xlu0.b32.cont [3/16] %v490, 128
    %646 = vxpose.xlu0.b32.cont [4/16] %v493, 128
    %647 = vxpose.xlu0.b32.cont [5/16] %v496, 128
    %648 = vxpose.xlu0.b32.cont [6/16] %v499, 128
    %649 = vxpose.xlu0.b32.cont [7/16] %v502, 128
    %650 = vxpose.xlu0.b32.cont [8/16] %v505, 128
    %651 = vxpose.xlu0.b32.cont [9/16] %v508, 128
    %652 = vxpose.xlu0.b32.cont [10/16] %v511, 128
    %653 = vxpose.xlu0.b32.cont [11/16] %v514, 128
    %654 = vxpose.xlu0.b32.cont [12/16] %v517, 128
    %655 = vxpose.xlu0.b32.cont [13/16] %v520, 128
    %656 = vxpose.xlu0.b32.cont [14/16] %v523, 128
    %657 = vxpose.xlu0.b32.cont [15/16] %v526, 128
    %658 = vxpose.xlu0.b32.end [16/16] %v529, 128
    %v659 = vpop.trf.xlu0
    %v660 = vpop.trf.xlu0
    %v661 = vpop.trf.xlu0
    %v662 = vpop.trf.xlu0
    %v663 = vpop.trf.xlu0
    %v664 = vpop.trf.xlu0
    %v665 = vpop.trf.xlu0
    %v666 = vpop.trf.xlu0
    %v667 = vpop.trf.xlu0
    %v668 = vpop.trf.xlu0
    %v669 = vpop.trf.xlu0
    %v670 = vpop.trf.xlu0
    %v671 = vpop.trf.xlu0
    %v672 = vpop.trf.xlu0
    %v673 = vpop.trf.xlu0
    %v674 = vpop.trf.xlu0
    %675 = vxpose.xlu0.b32.start [1/16] %v532, 128
    %676 = vxpose.xlu0.b32.cont [2/16] %v535, 128
    %677 = vxpose.xlu0.b32.cont [3/16] %v538, 128
    %678 = vxpose.xlu0.b32.cont [4/16] %v541, 128
    %679 = vxpose.xlu0.b32.cont [5/16] %v544, 128
    %680 = vxpose.xlu0.b32.cont [6/16] %v547, 128
    %681 = vxpose.xlu0.b32.cont [7/16] %v550, 128
    %682 = vxpose.xlu0.b32.cont [8/16] %v553, 128
    %683 = vxpose.xlu0.b32.cont [9/16] %v556, 128
    %684 = vxpose.xlu0.b32.cont [10/16] %v559, 128
    %685 = vxpose.xlu0.b32.cont [11/16] %v562, 128
    %686 = vxpose.xlu0.b32.cont [12/16] %v565, 128
    %687 = vxpose.xlu0.b32.cont [13/16] %v568, 128
    %688 = vxpose.xlu0.b32.cont [14/16] %v571, 128
    %689 = vxpose.xlu0.b32.cont [15/16] %v574, 128
    %690 = vxpose.xlu0.b32.end [16/16] %v577, 128
    %v691 = vpop.trf.xlu0
    %v692 = vpop.trf.xlu0
    %v693 = vpop.trf.xlu0
    %v694 = vpop.trf.xlu0
    %v695 = vpop.trf.xlu0
    %v696 = vpop.trf.xlu0
    %v697 = vpop.trf.xlu0
    %v698 = vpop.trf.xlu0
    %v699 = vpop.trf.xlu0
    %v700 = vpop.trf.xlu0
    %v701 = vpop.trf.xlu0
    %v702 = vpop.trf.xlu0
    %v703 = vpop.trf.xlu0
    %v704 = vpop.trf.xlu0
    %v705 = vpop.trf.xlu0
    %v706 = vpop.trf.xlu0
    %v707 = vld [vmem:[%s1] sm:$0x7]
    %709 = vset.pattern.permute.xlu0 0
    %710 = vperm.xlu0 %709, %v707
    %v711 = vpop.permute.xlu0 %710
    %v713 = vadd.f32 %v595, %v711
    %v714 = vadd.f32 %v627, %v711
    %v715 = vadd.f32 %v659, %v711
    %v716 = vadd.f32 %v691, %v711
    %v721 = vrot.slane %v714, 4
    %v722 = vrot.slane %v716, 4
    %vm723 = vcmask 1043456
    %v724 = vsel %vm723, %v713, %v721
    %v725 = vsel %vm723, %v715, %v722
    %728 = vst [vmem:[%s3] sm:$0x77] %v724
    %729 = vst [vmem:[%s3 + $0x8] sm:$0x77] %v725
    // Predicated region
    $region18: #{tpu_custom_call.1} parent=1 // pred_check
      _
    $region19: #{tpu_custom_call.1} parent=1 // pred_check_branch
      %731 = sbr.rel (0) target = $region21
    $region20: #{tpu_custom_call.1} parent=1 // pred_region
      _
    $region21: #{tpu_custom_call.1} parent=1 // pred_fallthru
      _
    // Predicated region
    $region22: #{tpu_custom_call.1} parent=1 // pred_check
      _
    $region23: #{tpu_custom_call.1} parent=1 // pred_check_branch
      %733 = sbr.rel (0) target = $region25
    $region24: #{tpu_custom_call.1} parent=1 // pred_region
      _
    $region25: #{tpu_custom_call.1} parent=1 // pred_fallthru
      _
    %734 = vsyncpa [#allocation3], 1

</llo_original>
